<compile_context>
chip_gen: v7x
topology: tpu7x:2x2x1
jax: 0.10.0
libtpu: 0.0.40
codegen_flags: <defaults>
</compile_context>

<pallas_src>
import jax
import jax.numpy as jnp
from jax.experimental import pallas as pl
from jax.experimental.pallas import tpu as pltpu


# --------------------------------------------------------------------------
# Pallas kernel: one (batch, channel-chunk) tile -> two MXU matmuls / channel
# --------------------------------------------------------------------------
def _upsample_kernel(uh_ref, uwt_ref, x_ref, o_ref):
    # uh_ref : (out_h, H)          float32   (U_h)
    # uwt_ref: (W, out_w)          float32   (U_w transposed)
    # x_ref  : (1, c_blk, H, W)    input tile
    # o_ref  : (1, c_blk, out_h, out_w) output tile
    c_blk = x_ref.shape[1]
    uh = uh_ref[...]
    uwt = uwt_ref[...]
    for c in range(c_blk):  # static unroll; c_blk is kept small
        xc = x_ref[0, c].astype(jnp.float32)                          # (H, W)
        t = jnp.dot(xc, uwt, preferred_element_type=jnp.float32)      # (H, out_w)
        o = jnp.dot(uh, t, preferred_element_type=jnp.float32)        # (out_h, out_w)
        o_ref[0, c] = o.astype(o_ref.dtype)


# --------------------------------------------------------------------------
# Wrapper helpers
# --------------------------------------------------------------------------
def _up_matrix(k1d, n_in, up, pad0, pad1):
    """Banded (n_out, n_in) matrix folding zero-stuffing + pad + flipped taps.

    out[y] = sum_i U[y, i] * x[i]  reproduces 1-D upfirdn (up=up, down=1).
    """
    kf = jnp.flip(k1d.astype(jnp.float32))
    klen = kf.shape[0]
    n_out = n_in * up + pad0 + pad1 - klen + 1
    y = jnp.arange(n_out)[:, None]
    i = jnp.arange(n_in)[None, :]
    a = up * i + pad0 - y                     # FIR tap hit by input i at output y
    valid = (a >= 0) & (a < klen)
    u = jnp.where(valid, jnp.take(kf, jnp.clip(a, 0, klen - 1)), 0.0)
    return u.astype(jnp.float32)              # (n_out, n_in)


def _pick_c_block(c, out_h, out_w, itemsize, budget_bytes=2 * 1024 * 1024):
    """Largest divisor of C whose output block stays under ~budget_bytes."""
    per_ch = max(1, out_h * out_w * itemsize)
    cb = max(1, min(c, budget_bytes // per_ch))
    while c % cb:
        cb -= 1
    return cb


def upsample_upfirdn2d(x, k1d, up, pad):
    """upfirdn2d(x, outer(k1d, k1d), up=up, down=1, pad=pad) via Pallas."""
    b, c, h, w = x.shape
    pad0, pad1 = pad
    klen = int(k1d.shape[0])
    out_h = h * up + pad0 + pad1 - klen + 1
    out_w = w * up + pad0 + pad1 - klen + 1

    uh = _up_matrix(k1d, h, up, pad0, pad1)          # (out_h, h)
    uwt = _up_matrix(k1d, w, up, pad0, pad1).T       # (w, out_w)

    c_blk = _pick_c_block(c, out_h, out_w, x.dtype.itemsize)
    grid = (b, c // c_blk)

    return pl.pallas_call(
        _upsample_kernel,
        out_shape=jax.ShapeDtypeStruct((b, c, out_h, out_w), x.dtype),
        grid=grid,
        in_specs=[
            pl.BlockSpec((out_h, h), lambda bi, ci: (0, 0)),           # U_h
            pl.BlockSpec((w, out_w), lambda bi, ci: (0, 0)),           # U_w^T
            pl.BlockSpec((1, c_blk, h, w), lambda bi, ci: (bi, ci, 0, 0)),
        ],
        out_specs=pl.BlockSpec((1, c_blk, out_h, out_w),
                               lambda bi, ci: (bi, ci, 0, 0)),
        compiler_params=pltpu.CompilerParams(
            dimension_semantics=("parallel", "parallel")),
    )(uh, uwt, x)


# --------------------------------------------------------------------------
# Module port
# --------------------------------------------------------------------------
class Upsample:
    """JAX/Pallas port of the PyTorch Upsample module (upfirdn2d, up=factor)."""

    def __init__(self, kernel, factor=2):
        self.factor = factor
        k1 = jnp.asarray(kernel, dtype=jnp.float32)
        if k1.ndim != 1:
            # TODO(synk): non-separable 2-D FIR kernels are not expressible as
            # two matmuls; the module is always built with a 1-D kernel.
            raise NotImplementedError("only separable (1-D) FIR kernels supported")
        # make_kernel: outer product, normalize, then scale by factor**2.
        k2 = k1[None, :] * k1[:, None]
        k2 = k2 / jnp.sum(k2) * (factor ** 2)
        self.kernel2d = k2                        # == the torch 'kernel' buffer
        # Separable 1-D factor: kernel2d == outer(k1d, k1d).
        self.k1d = k1 / jnp.sum(k1) * factor
        p = int(k2.shape[0]) - factor
        self.pad = ((p + 1) // 2 + factor - 1, p // 2)

    def __call__(self, x):
        return upsample_upfirdn2d(x, self.k1d, self.factor, self.pad)


# --------------------------------------------------------------------------
# Pure-JAX reference (direct port of upfirdn2d_native, pad >= 0, down=1)
# --------------------------------------------------------------------------
def _upfirdn2d_reference(x, kernel2d, up, pad):
    b, c, h, w = x.shape
    kh, kw = kernel2d.shape
    pad0, pad1 = pad
    z = jnp.zeros((b, c, h * up, w * up), x.dtype)
    z = z.at[:, :, ::up, ::up].set(x)
    z = jnp.pad(z, ((0, 0), (0, 0), (pad0, pad1), (pad0, pad1)))
    kf = jnp.flip(kernel2d, (0, 1))
    out_h = h * up + pad0 + pad1 - kh + 1
    out_w = w * up + pad0 + pad1 - kw + 1
    out = jnp.zeros((b, c, out_h, out_w), jnp.float32)
    for a in range(kh):
        for bb in range(kw):
            out = out + kf[a, bb] * z[:, :, a:a + out_h, bb:bb + out_w].astype(jnp.float32)
    return out.astype(x.dtype)


if __name__ == "__main__":
    key = jax.random.PRNGKey(0)
    B, C, H, W = 2, 4, 16, 16
    x = jax.random.normal(key, (B, C, H, W), dtype=jnp.float32)

    up = Upsample([1, 3, 3, 1], factor=2)
    out = up(x)
    out = jax.block_until_ready(out)

    assert out.shape == (B, C, 2 * H, 2 * W), out.shape

    expected = _upfirdn2d_reference(x, up.kernel2d, up.factor, up.pad)
    max_err = float(jnp.max(jnp.abs(out - expected)))
    assert jnp.allclose(out, expected, atol=1e-5, rtol=1e-5), max_err

    print("KERNEL_OK")
</pallas_src>

<mosaic_0001>
module attributes {stable_mosaic.version = 11 : i64} {
  func.func @_upsample_kernel(%arg0: i32, %arg1: i32, %arg2: memref<32x16xf32, #tpu.memory_space<vmem>>, %arg3: memref<16x32xf32, #tpu.memory_space<vmem>>, %arg4: memref<1x4x16x16xf32, #tpu.memory_space<vmem>>, %arg5: memref<1x4x32x32xf32, #tpu.memory_space<vmem>>) attributes {dimension_semantics = [#tpu.dimension_semantics<parallel>, #tpu.dimension_semantics<parallel>], iteration_bounds = array<i64: 2, 1>, scalar_prefetch = 0 : i64, scratch_operands = 0 : i64, tpu.core_type = #tpu.core_type<tc>, window_params = [{pipeline_mode = #tpu.pipeline_mode<synchronous>, transform_indices = @transform_0, window_bounds = array<i64: 32, 16>}, {pipeline_mode = #tpu.pipeline_mode<synchronous>, transform_indices = @transform_1, window_bounds = array<i64: 16, 32>}, {transform_indices = @transform_2, window_bounds = array<i64: 1, 4, 16, 16>}, {transform_indices = @transform_3, window_bounds = array<i64: 1, 4, 32, 32>}]} {
    %c0 = arith.constant 0 : index
    %c0_0 = arith.constant 0 : index
    %0 = vector.load %arg2[%c0, %c0_0] : memref<32x16xf32, #tpu.memory_space<vmem>>, vector<32x16xf32>
    %c0_1 = arith.constant 0 : index
    %c0_2 = arith.constant 0 : index
    %1 = vector.load %arg3[%c0_1, %c0_2] : memref<16x32xf32, #tpu.memory_space<vmem>>, vector<16x32xf32>
    %c0_3 = arith.constant 0 : index
    %c0_4 = arith.constant 0 : index
    %c0_5 = arith.constant 0 : index
    %c0_6 = arith.constant 0 : index
    %2 = vector.load %arg4[%c0_3, %c0_4, %c0_5, %c0_6] : memref<1x4x16x16xf32, #tpu.memory_space<vmem>>, vector<1x1x16x16xf32>
    %3 = vector.shape_cast %2 : vector<1x1x16x16xf32> to vector<16x16xf32>
    %cst = arith.constant dense<0.000000e+00> : vector<16x32xf32>
    %4 = tpu.matmul %3, %1, %cst {dimension_numbers = #tpu.dot_dimension_numbers<[1], [0], [0], [1], [0, 0, 1, 1], [], []>} : vector<16x16xf32>, vector<16x32xf32>, vector<16x32xf32> -> vector<16x32xf32>
    %cst_7 = arith.constant dense<0.000000e+00> : vector<32x32xf32>
    %5 = tpu.matmul %0, %4, %cst_7 {dimension_numbers = #tpu.dot_dimension_numbers<[1], [0], [0], [1], [0, 0, 1, 1], [], []>} : vector<32x16xf32>, vector<16x32xf32>, vector<32x32xf32> -> vector<32x32xf32>
    %c0_8 = arith.constant 0 : index
    %c0_9 = arith.constant 0 : index
    %c0_10 = arith.constant 0 : index
    %c0_11 = arith.constant 0 : index
    %6 = vector.load %arg5[%c0_8, %c0_9, %c0_10, %c0_11] : memref<1x4x32x32xf32, #tpu.memory_space<vmem>>, vector<1x1x32x32xf32>
    %7 = vector.shape_cast %6 : vector<1x1x32x32xf32> to vector<32x32xf32>
    %8 = vector.shape_cast %5 : vector<32x32xf32> to vector<1x1x32x32xf32>
    tpu.vector_store %arg5[%c0_8, %c0_9, %c0_10, %c0_11], %8 {strides = array<i32>} : memref<1x4x32x32xf32, #tpu.memory_space<vmem>>, vector<1x1x32x32xf32>,
    %c0_12 = arith.constant 0 : index
    %c1 = arith.constant 1 : index
    %c0_13 = arith.constant 0 : index
    %c0_14 = arith.constant 0 : index
    %9 = vector.load %arg4[%c0_12, %c1, %c0_13, %c0_14] : memref<1x4x16x16xf32, #tpu.memory_space<vmem>>, vector<1x1x16x16xf32>
    %10 = vector.shape_cast %9 : vector<1x1x16x16xf32> to vector<16x16xf32>
    %cst_15 = arith.constant dense<0.000000e+00> : vector<16x32xf32>
    %11 = tpu.matmul %10, %1, %cst_15 {dimension_numbers = #tpu.dot_dimension_numbers<[1], [0], [0], [1], [0, 0, 1, 1], [], []>} : vector<16x16xf32>, vector<16x32xf32>, vector<16x32xf32> -> vector<16x32xf32>
    %cst_16 = arith.constant dense<0.000000e+00> : vector<32x32xf32>
    %12 = tpu.matmul %0, %11, %cst_16 {dimension_numbers = #tpu.dot_dimension_numbers<[1], [0], [0], [1], [0, 0, 1, 1], [], []>} : vector<32x16xf32>, vector<16x32xf32>, vector<32x32xf32> -> vector<32x32xf32>
    %c0_17 = arith.constant 0 : index
    %c1_18 = arith.constant 1 : index
    %c0_19 = arith.constant 0 : index
    %c0_20 = arith.constant 0 : index
    %13 = vector.load %arg5[%c0_17, %c1_18, %c0_19, %c0_20] : memref<1x4x32x32xf32, #tpu.memory_space<vmem>>, vector<1x1x32x32xf32>
    %14 = vector.shape_cast %13 : vector<1x1x32x32xf32> to vector<32x32xf32>
    %15 = vector.shape_cast %12 : vector<32x32xf32> to vector<1x1x32x32xf32>
    tpu.vector_store %arg5[%c0_17, %c1_18, %c0_19, %c0_20], %15 {strides = array<i32>} : memref<1x4x32x32xf32, #tpu.memory_space<vmem>>, vector<1x1x32x32xf32>,
    %c0_21 = arith.constant 0 : index
    %c2 = arith.constant 2 : index
    %c0_22 = arith.constant 0 : index
    %c0_23 = arith.constant 0 : index
    %16 = vector.load %arg4[%c0_21, %c2, %c0_22, %c0_23] : memref<1x4x16x16xf32, #tpu.memory_space<vmem>>, vector<1x1x16x16xf32>
    %17 = vector.shape_cast %16 : vector<1x1x16x16xf32> to vector<16x16xf32>
    %cst_24 = arith.constant dense<0.000000e+00> : vector<16x32xf32>
    %18 = tpu.matmul %17, %1, %cst_24 {dimension_numbers = #tpu.dot_dimension_numbers<[1], [0], [0], [1], [0, 0, 1, 1], [], []>} : vector<16x16xf32>, vector<16x32xf32>, vector<16x32xf32> -> vector<16x32xf32>
    %cst_25 = arith.constant dense<0.000000e+00> : vector<32x32xf32>
    %19 = tpu.matmul %0, %18, %cst_25 {dimension_numbers = #tpu.dot_dimension_numbers<[1], [0], [0], [1], [0, 0, 1, 1], [], []>} : vector<32x16xf32>, vector<16x32xf32>, vector<32x32xf32> -> vector<32x32xf32>
    %c0_26 = arith.constant 0 : index
    %c2_27 = arith.constant 2 : index
    %c0_28 = arith.constant 0 : index
    %c0_29 = arith.constant 0 : index
    %20 = vector.load %arg5[%c0_26, %c2_27, %c0_28, %c0_29] : memref<1x4x32x32xf32, #tpu.memory_space<vmem>>, vector<1x1x32x32xf32>
    %21 = vector.shape_cast %20 : vector<1x1x32x32xf32> to vector<32x32xf32>
    %22 = vector.shape_cast %19 : vector<32x32xf32> to vector<1x1x32x32xf32>
    tpu.vector_store %arg5[%c0_26, %c2_27, %c0_28, %c0_29], %22 {strides = array<i32>} : memref<1x4x32x32xf32, #tpu.memory_space<vmem>>, vector<1x1x32x32xf32>,
    %c0_30 = arith.constant 0 : index
    %c3 = arith.constant 3 : index
    %c0_31 = arith.constant 0 : index
    %c0_32 = arith.constant 0 : index
    %23 = vector.load %arg4[%c0_30, %c3, %c0_31, %c0_32] : memref<1x4x16x16xf32, #tpu.memory_space<vmem>>, vector<1x1x16x16xf32>
    %24 = vector.shape_cast %23 : vector<1x1x16x16xf32> to vector<16x16xf32>
    %cst_33 = arith.constant dense<0.000000e+00> : vector<16x32xf32>
    %25 = tpu.matmul %24, %1, %cst_33 {dimension_numbers = #tpu.dot_dimension_numbers<[1], [0], [0], [1], [0, 0, 1, 1], [], []>} : vector<16x16xf32>, vector<16x32xf32>, vector<16x32xf32> -> vector<16x32xf32>
    %cst_34 = arith.constant dense<0.000000e+00> : vector<32x32xf32>
    %26 = tpu.matmul %0, %25, %cst_34 {dimension_numbers = #tpu.dot_dimension_numbers<[1], [0], [0], [1], [0, 0, 1, 1], [], []>} : vector<32x16xf32>, vector<16x32xf32>, vector<32x32xf32> -> vector<32x32xf32>
    %c0_35 = arith.constant 0 : index
    %c3_36 = arith.constant 3 : index
    %c0_37 = arith.constant 0 : index
    %c0_38 = arith.constant 0 : index
    %27 = vector.load %arg5[%c0_35, %c3_36, %c0_37, %c0_38] : memref<1x4x32x32xf32, #tpu.memory_space<vmem>>, vector<1x1x32x32xf32>
    %28 = vector.shape_cast %27 : vector<1x1x32x32xf32> to vector<32x32xf32>
    %29 = vector.shape_cast %26 : vector<32x32xf32> to vector<1x1x32x32xf32>
    tpu.vector_store %arg5[%c0_35, %c3_36, %c0_37, %c0_38], %29 {strides = array<i32>} : memref<1x4x32x32xf32, #tpu.memory_space<vmem>>, vector<1x1x32x32xf32>,
    return
  }
  func.func @transform_0(%arg0: i32, %arg1: i32) -> (i32, i32) {
    %c0_i32 = arith.constant 0 : i32
    %c0_i32_0 = arith.constant 0 : i32
    %c0_i32_1 = arith.constant 0 : i32
    return %c0_i32, %c0_i32_0 : i32, i32
  }
  func.func @transform_1(%arg0: i32, %arg1: i32) -> (i32, i32) {
    %c0_i32 = arith.constant 0 : i32
    %c0_i32_0 = arith.constant 0 : i32
    %c0_i32_1 = arith.constant 0 : i32
    return %c0_i32, %c0_i32_0 : i32, i32
  }
  func.func @transform_2(%arg0: i32, %arg1: i32) -> (i32, i32, i32, i32) {
    %c0_i32 = arith.constant 0 : i32
    %c0_i32_0 = arith.constant 0 : i32
    %c0_i32_1 = arith.constant 0 : i32
    return %arg0, %arg1, %c0_i32, %c0_i32_0 : i32, i32, i32, i32
  }
  func.func @transform_3(%arg0: i32, %arg1: i32) -> (i32, i32, i32, i32) {
    %c0_i32 = arith.constant 0 : i32
    %c0_i32_0 = arith.constant 0 : i32
    %c0_i32_1 = arith.constant 0 : i32
    return %arg0, %arg1, %c0_i32, %c0_i32_0 : i32, i32, i32, i32
  }
}

</mosaic_0001>

<llo_original>
// kernel: tpu_custom_call.1
$region0: #{tpu_custom_call.1}
  #allocation0 [shape = 'u32[]', space=smem, size = 0x4, offset = 0x4, fixed_abs, tag = 'smem constant byte address 0x4 - core index']
  #allocation1 [shape = 'u32[144,128]{1,0:T(1,128)}', space=vmem, size = 0x12000, scoped, tag = 'internal scratch']
  %s0 = inlined_call_operand.vmem [shape: f32[32,16], index: 0, kind: input, shape index: {}]
  %s1 = inlined_call_operand.vmem [shape: f32[16,32], index: 1, kind: input, shape index: {}]
  %s2 = inlined_call_operand.hbm [shape: f32[2,4,16,16], index: 2, kind: input, shape index: {}]
  %s3 = inlined_call_operand.hbm [shape: f32[2,4,32,32], index: 3, kind: output, shape index: {}]
  %s4 = sld [smem:[#allocation0]]
  $region49: #{tpu_custom_call.1} parent=0
    _
  %s6 = ssub.s32 1, %s4
  %s7 = scalar_select 0, %s6, %s4
  $region1: #{tpu_custom_call.1} parent=0
    #allocation2 [shape = 'u8[65536]{0}', space=vmem, size = 0x10000, scoped, tag = 'input window, operand 2']
    #allocation3 [shape = 's32[2]{0}', space=sflag, size = 0x8, scoped, tag = 'scoped memory for tpu_custom_call.1']
    #allocation4 [shape = 's32[2]{0}', space=sflag, size = 0x8, scoped, tag = 'scoped memory for tpu_custom_call.1']
    #allocation5 [shape = 'u8[131072]{0}', space=vmem, size = 0x20000, scoped, tag = 'output window, operand 0']
    %8 = vsyncpa [#allocation3], 0
    %s9 = scalar_lea.sflag [#allocation3], 1
    %10 = vsyncpa %s9, 0
    %11 = vsyncpa [#allocation4], 0
    %s12 = scalar_lea.sflag [#allocation4], 1
    %13 = vsyncpa %s12, 0
    loop: start=0, step=1, limit=4
    $region2: #{tpu_custom_call.1} parent=1 // loop_pre_header
      _
    $region3: #{tpu_custom_call.1} parent=1 // loop_header
      %s15 = sphi 0, %s19
      %p16 = scmp.ge.s32.totalorder %s15, 4
      %s22 = sphi 0, %s34
      %s23 = sphi 0, %s30
      %s24 = sphi 0, %s22
      %s25 = sphi 0, %s23
      %s26 = sphi 0, %s24
      %s27 = sphi 0, %s25
      %s35 = sphi 0, %s35
      %s37 = sphi 0, %s35
      %s38 = sphi 0, %s37
      %s52 = sphi 0, %s38
      %s56 = sphi 0, %s56
      %s58 = sphi 0, %s56
      %s59 = sphi 0, %s58
      %s73 = sphi 0, %s59
      %s81 = sphi 0, %s83
      %s84 = sphi 0, %s81
      %s85 = sphi 0, %s84
      %s101 = sphi 0, %s85
      %s109 = sphi 0, %s111
      %s112 = sphi 0, %s109
      %s113 = sphi 0, %s112
      %s129 = sphi 0, %s113
    $region4: #{tpu_custom_call.1} parent=1 // loop_header_branch
      %18 = sbr.rel (%p16) target = $region8
    $region5: #{tpu_custom_call.1} parent=1 // loop_body
      %s20 = ssub.s32 %s15, 1
      %s21 = ssub.s32 %s15, 2
      %s28 = sadd.s32 1, %s23
      %p29 = scmp.ge.s32.totalorder %s28, 1
      %s30 = scalar_select %p29, 0, %s28
      %s31 = sadd.s32 1, %s22
      %s32 = scalar_select %p29, %s31, %s22
      %p33 = scmp.ge.s32.totalorder %s32, 2
      %s34 = scalar_select %p33, 0, %s32
      %s36 = sadd.s32 %s35, 1
      %p39 = scmp.eq.s32.totalorder %s15, 1
      %p40 = scmp.ne.s32.totalorder %s35, %s37
      %p41 = scmp.eq.s32.totalorder %s15, 0
      %p42 = por %p40, %p41
      %p43 = scmp.ne.s32.totalorder %s35, %s37
      %p44 = scmp.eq.s32.totalorder %s20, 1
      %p45 = por %p43, %p44
      %p46 = scmp.ne.s32.totalorder %s37, %s38
      %p47 = scmp.eq.s32.totalorder %s20, 0
      %p48 = por %p46, %p47
      %p49 = scmp.ne.s32.totalorder %s37, %s38
      %p50 = scmp.eq.s32.totalorder %s21, 1
      %p51 = por %p49, %p50
      %p53 = scmp.ne.s32.totalorder %s38, %s52
      %p54 = scmp.eq.s32.totalorder %s21, 0
      %p55 = por %p53, %p54
      %s57 = sadd.s32 %s56, 1
      %p60 = scmp.eq.s32.totalorder %s15, 1
      %p61 = scmp.ne.s32.totalorder %s56, %s58
      %p62 = scmp.eq.s32.totalorder %s15, 0
      %p63 = por %p61, %p62
      %p64 = scmp.ne.s32.totalorder %s56, %s58
      %p65 = scmp.eq.s32.totalorder %s20, 1
      %p66 = por %p64, %p65
      %p67 = scmp.ne.s32.totalorder %s58, %s59
      %p68 = scmp.eq.s32.totalorder %s20, 0
      %p69 = por %p67, %p68
      %p70 = scmp.ne.s32.totalorder %s58, %s59
      %p71 = scmp.eq.s32.totalorder %s21, 1
      %p72 = por %p70, %p71
      %p74 = scmp.ne.s32.totalorder %s59, %s73
      %p75 = scmp.eq.s32.totalorder %s21, 0
      %p76 = por %p74, %p75
      %s77 = ssub.s32 %s22, %s34
      %s78 = ssub.s32 %s23, %s30
      %s79 = sor.u32 %s77, %s78
      %p80 = scmp.eq.s32.totalorder %s79, 0
      %s82 = sadd.s32 %s81, 1
      %s83 = scalar_select %p80, %s81, %s82
      %p86 = pneg %p80
      %p87 = scmp.eq.s32.totalorder %s15, 1
      %p88 = por %p86, %p87
      %p89 = scmp.ne.s32.totalorder %s81, %s84
      %p90 = scmp.eq.s32.totalorder %s15, 0
      %p91 = por %p89, %p90
      %p92 = scmp.ne.s32.totalorder %s81, %s84
      %p93 = scmp.eq.s32.totalorder %s20, 1
      %p94 = por %p92, %p93
      %p95 = scmp.ne.s32.totalorder %s84, %s85
      %p96 = scmp.eq.s32.totalorder %s20, 0
      %p97 = por %p95, %p96
      %p98 = scmp.ne.s32.totalorder %s84, %s85
      %p99 = scmp.eq.s32.totalorder %s21, 1
      %p100 = por %p98, %p99
      %p102 = scmp.ne.s32.totalorder %s85, %s101
      %p103 = scmp.eq.s32.totalorder %s21, 0
      %p104 = por %p102, %p103
      %s105 = ssub.s32 %s22, %s34
      %s106 = ssub.s32 %s23, %s30
      %s107 = sor.u32 %s105, %s106
      %p108 = scmp.eq.s32.totalorder %s107, 0
      %s110 = sadd.s32 %s109, 1
      %s111 = scalar_select %p108, %s109, %s110
      %p114 = pneg %p108
      %p115 = scmp.eq.s32.totalorder %s15, 1
      %p116 = por %p114, %p115
      %p117 = scmp.ne.s32.totalorder %s109, %s112
      %p118 = scmp.eq.s32.totalorder %s15, 0
      %p119 = por %p117, %p118
      %p120 = scmp.ne.s32.totalorder %s109, %s112
      %p121 = scmp.eq.s32.totalorder %s20, 1
      %p122 = por %p120, %p121
      %p123 = scmp.ne.s32.totalorder %s112, %s113
      %p124 = scmp.eq.s32.totalorder %s20, 0
      %p125 = por %p123, %p124
      %p126 = scmp.ne.s32.totalorder %s112, %s113
      %p127 = scmp.eq.s32.totalorder %s21, 1
      %p128 = por %p126, %p127
      %p130 = scmp.ne.s32.totalorder %s113, %s129
      %p131 = scmp.eq.s32.totalorder %s21, 0
      %p132 = por %p130, %p131
      %p133 = scmp.le.s32.totalorder 1, %s15
      %p134 = scmp.lt.s32.totalorder %s15, 3
      %p135 = pnand %p133, %p134
      %p136 = pneg %p135
      // Predicated region
      $region9: #{tpu_custom_call.1} parent=5 // pred_check
        _
      $region10: #{tpu_custom_call.1} parent=5 // pred_check_branch
        %138 = sbr.rel (%p135) target = $region12
      $region11: #{tpu_custom_call.1} parent=5 // pred_region
        %s139 = ssub.s32 %s15, 1
        // Predicated region
        $region13: #{tpu_custom_call.1} parent=11 // pred_check
          %p140 = pneg %p48
        $region14: #{tpu_custom_call.1} parent=11 // pred_check_branch
          %142 = sbr.rel (%p140) target = $region16
        $region15: #{tpu_custom_call.1} parent=11 // pred_region
          _
        $region16: #{tpu_custom_call.1} parent=11 // pred_fallthru
          _
        // Predicated region
        $region17: #{tpu_custom_call.1} parent=11 // pred_check
          %p143 = pneg %p69
        $region18: #{tpu_custom_call.1} parent=11 // pred_check_branch
          %145 = sbr.rel (%p143) target = $region20
        $region19: #{tpu_custom_call.1} parent=11 // pred_region
          _
        $region20: #{tpu_custom_call.1} parent=11 // pred_fallthru
          _
      $region12: #{tpu_custom_call.1} parent=5 // pred_fallthru
        _
      %p146 = scmp.lt.s32.totalorder %s15, 2
      // Predicated region
      $region21: #{tpu_custom_call.1} parent=5 // pred_check
        %p147 = pneg %p146
      $region22: #{tpu_custom_call.1} parent=5 // pred_check_branch
        %149 = sbr.rel (%p147) target = $region24
      $region23: #{tpu_custom_call.1} parent=5 // pred_region
        // Predicated region
        $region25: #{tpu_custom_call.1} parent=23 // pred_check
          %p150 = pneg %p91
        $region26: #{tpu_custom_call.1} parent=23 // pred_check_branch
          %152 = sbr.rel (%p150) target = $region28
        $region27: #{tpu_custom_call.1} parent=23 // pred_region
          %s153 = sand.u32 %s81, 1
          %s154 = scalar_lea.sflag [#allocation3], %s153
          %s155 = sand.u32 %s81, 1
          %s156 = smul.addr %s155, 64
          %s157 = scalar_lea.vmem [#allocation2], %s156
          %s158 = smul.u32 4, %s23
          %s160 = ssub.s32 1024, 1024
          %161 = vsyncadd %s154, %s160
          %s162 = smul.addr %s158, 2
          %s163 = smul.addr %s22, 8
          %s164 = sadd.s32 %s162, %s163
          %s165 = smul.addr %s164, 128
          %s166 = scalar_lea.hbm %s2, %s165
          %s167 = sshll.u32 %s157, 4
          %s168 = int_to_ptr.vmem [resolvable:$true] %s167
          %173 = dma.hbm_to_vmem [thread:$0]  %s166, 1024, %s168, %s154, 128, 128, 8
        $region28: #{tpu_custom_call.1} parent=23 // pred_fallthru
          _
      $region24: #{tpu_custom_call.1} parent=5 // pred_fallthru
        _
      %p174 = scmp.le.s32.totalorder 1, %s15
      %p175 = scmp.lt.s32.totalorder %s15, 3
      %p176 = pnand %p174, %p175
      %p177 = pneg %p176
      // Predicated region
      $region29: #{tpu_custom_call.1} parent=5 // pred_check
        _
      $region30: #{tpu_custom_call.1} parent=5 // pred_check_branch
        %179 = sbr.rel (%p176) target = $region32
      $region31: #{tpu_custom_call.1} parent=5 // pred_region
        %s180 = ssub.s32 %s15, 1
        %s181 = sand.u32 %s84, 1
        %s182 = scalar_lea.sflag [#allocation3], %s181
        %s183 = sand.u32 %s84, 1
        %s184 = smul.addr %s183, 64
        %s185 = scalar_lea.vmem [#allocation2], %s184
        // Predicated region
        $region33: #{tpu_custom_call.1} parent=31 // pred_check
          %p186 = pneg %p97
        $region34: #{tpu_custom_call.1} parent=31 // pred_check_branch
          %188 = sbr.rel (%p186) target = $region36
        $region35: #{tpu_custom_call.1} parent=31 // pred_region
          %189 = dma.done %s182, 1024
        $region36: #{tpu_custom_call.1} parent=31 // pred_fallthru
          _
        %p190 = pneg %p48
        %p191 = pneg %p45
        %p192 = pneg %p69
        %p193 = pneg %p66
        %s194 = sand.u32 %s84, 1
        %s195 = scalar_lea.sflag [#allocation3], %s194
        %s196 = sand.u32 %s84, 1
        %s197 = smul.addr %s196, 64
        %s198 = scalar_lea.vmem [#allocation2], %s197
        %p199 = pneg %p97
        %p200 = pneg %p94
        %p201 = pneg %p125
        %p202 = pneg %p122
        %s203 = sand.u32 %s112, 1
        %s204 = scalar_lea.sflag [#allocation4], %s203
        %s205 = sand.u32 %s112, 1
        %s206 = smul.addr %s205, 128
        %s207 = scalar_lea.vmem [#allocation5], %s206
        %s208 = smul.u32 4, %s25
        %s209 = smul.u32 4, %s25
        %v210 = vld [vmem:[%s0] sm:$0xff]
        %v211 = vld [vmem:[%s0 + $0x8] sm:$0xff]
        %v212 = vld [vmem:[%s0 + $0x10] sm:$0xff]
        %v213 = vld [vmem:[%s0 + $0x18] sm:$0xff]
        %v214 = vld [vmem:[%s1] sm:$0xff]
        %v215 = vld [vmem:[%s1 + $0x8] sm:$0xff]
        %v216 = vld [vmem:[%s185] sm:$0xff]
        %v217 = vld [vmem:[%s185 + $0x8] sm:$0xff]
        %vm218 = vcmask 130048
        %v220 = vsel %vm218, %v216, 0
        %v223 = vsel %vm218, %v217, 0
        %225 = vmatprep.subr.mxu0 0.0
        %226 = vmatpush1.msra.mxu0 %v214
        %227 = vmatprep.subr.mxu0 0.0
        %228 = vmatpush1.msra.mxu0 %v215
        %229 = vmatprep.subr.mxu0 0.0
        %230 = vmatpush1.msra.mxu0 0.0
        %231 = vmatprep.subr.mxu0 0.0
        %232 = vmatpush1.msra.mxu0 0.0
        %233 = vmatprep.subr.mxu0 0.0
        %234 = vmatpush1.msra.mxu0 0.0
        %235 = vmatprep.subr.mxu0 0.0
        %236 = vmatpush1.msra.mxu0 0.0
        %237 = vmatprep.subr.mxu0 0.0
        %238 = vmatpush1.msra.mxu0 0.0
        %239 = vmatprep.subr.mxu0 0.0
        %240 = vmatpush1.msra.mxu0 0.0
        %241 = vmatprep.subr.mxu0 0.0
        %242 = vmatpush1.msra.mxu0 0.0
        %243 = vmatprep.subr.mxu0 0.0
        %244 = vmatpush1.msra.mxu0 0.0
        %245 = vmatprep.subr.mxu0 0.0
        %246 = vmatpush1.msra.mxu0 0.0
        %247 = vmatprep.subr.mxu0 0.0
        %248 = vmatpush1.msra.mxu0 0.0
        %249 = vmatprep.subr.mxu0 0.0
        %250 = vmatpush1.msra.mxu0 0.0
        %251 = vmatprep.subr.mxu0 0.0
        %252 = vmatpush1.msra.mxu0 0.0
        %253 = vmatprep.subr.mxu0 0.0
        %254 = vmatpush1.msra.mxu0 0.0
        %255 = vmatprep.subr.mxu0 0.0
        %256 = vmatpush1.msra.mxu0 0.0
        %257 = vmatprep.subr.mxu0 0.0
        %258 = vmatpush1.msra.mxu0 0.0
        %259 = vmatprep.subr.mxu0 0.0
        %260 = vmatpush1.msra.mxu0 0.0
        %261 = vmatprep.subr.mxu0 0.0
        %262 = vmatpush1.msra.mxu0 0.0
        %263 = vmatprep.subr.mxu0 0.0
        %264 = vmatpush1.msra.mxu0 0.0
        %265 = vmatprep.subr.mxu0 0.0
        %266 = vmatpush1.msra.mxu0 0.0
        %267 = vmatprep.subr.mxu0 0.0
        %268 = vmatpush1.msra.mxu0 0.0
        %269 = vmatprep.subr.mxu0 0.0
        %270 = vmatpush1.msra.mxu0 0.0
        %271 = vmatprep.subr.mxu0 0.0
        %272 = vmatpush1.msra.mxu0 0.0
        %273 = vmatprep.subr.mxu0 0.0
        %274 = vmatpush1.msra.mxu0 0.0
        %275 = vmatprep.subr.mxu0 0.0
        %276 = vmatpush1.msra.mxu0 0.0
        %277 = vmatprep.subr.mxu0 0.0
        %278 = vmatpush1.msra.mxu0 0.0
        %279 = vmatprep.subr.mxu0 0.0
        %280 = vmatpush1.msra.mxu0 0.0
        %281 = vmatprep.subr.mxu0 0.0
        %282 = vmatpush1.msra.mxu0 0.0
        %283 = vmatprep.subr.mxu0 0.0
        %284 = vmatpush1.msra.mxu0 0.0
        %285 = vmatprep.subr.mxu0 0.0
        %286 = vmatpush1.msra.mxu0 0.0
        %287 = vmatprep.subr.mxu0 0.0
        %288 = vmatpush1.msra.mxu0 0.0
        %289 = vmatprep.mubr.f32.mxu0 0.0
        %290 = vmatmul.mubr.f32.gmra.mrb[0].mxu0 %v220
        %v291 = vpop.f32.mrb[0].mxu0
        %v292 = vadd.f32 0.0, %v291
        %v293 = vpop.f32.mrb[0].mxu0
        %294 = vmatprep.mubr.f32.mxu0 0.0
        %295 = vmatmul.mubr.f32.gmra.mrb[0].mxu0 %v223
        %v296 = vpop.f32.mrb[0].mxu0
        %v297 = vadd.f32 0.0, %v296
        %v298 = vpop.f32.mrb[0].mxu0
        %299 = vdwg.mxu0
        %v301 = vsel %vm218, %v210, 0
        %v304 = vsel %vm218, %v211, 0
        %v307 = vsel %vm218, %v212, 0
        %v310 = vsel %vm218, %v213, 0
        %312 = vmatprep.subr.mxu0 0.0
        %313 = vmatpush1.msra.mxu0 %v292
        %314 = vmatprep.subr.mxu0 0.0
        %315 = vmatpush1.msra.mxu0 %v297
        %316 = vmatprep.subr.mxu0 0.0
        %317 = vmatpush1.msra.mxu0 0.0
        %318 = vmatprep.subr.mxu0 0.0
        %319 = vmatpush1.msra.mxu0 0.0
        %320 = vmatprep.subr.mxu0 0.0
        %321 = vmatpush1.msra.mxu0 0.0
        %322 = vmatprep.subr.mxu0 0.0
        %323 = vmatpush1.msra.mxu0 0.0
        %324 = vmatprep.subr.mxu0 0.0
        %325 = vmatpush1.msra.mxu0 0.0
        %326 = vmatprep.subr.mxu0 0.0
        %327 = vmatpush1.msra.mxu0 0.0
        %328 = vmatprep.subr.mxu0 0.0
        %329 = vmatpush1.msra.mxu0 0.0
        %330 = vmatprep.subr.mxu0 0.0
        %331 = vmatpush1.msra.mxu0 0.0
        %332 = vmatprep.subr.mxu0 0.0
        %333 = vmatpush1.msra.mxu0 0.0
        %334 = vmatprep.subr.mxu0 0.0
        %335 = vmatpush1.msra.mxu0 0.0
        %336 = vmatprep.subr.mxu0 0.0
        %337 = vmatpush1.msra.mxu0 0.0
        %338 = vmatprep.subr.mxu0 0.0
        %339 = vmatpush1.msra.mxu0 0.0
        %340 = vmatprep.subr.mxu0 0.0
        %341 = vmatpush1.msra.mxu0 0.0
        %342 = vmatprep.subr.mxu0 0.0
        %343 = vmatpush1.msra.mxu0 0.0
        %344 = vmatprep.subr.mxu0 0.0
        %345 = vmatpush1.msra.mxu0 0.0
        %346 = vmatprep.subr.mxu0 0.0
        %347 = vmatpush1.msra.mxu0 0.0
        %348 = vmatprep.subr.mxu0 0.0
        %349 = vmatpush1.msra.mxu0 0.0
        %350 = vmatprep.subr.mxu0 0.0
        %351 = vmatpush1.msra.mxu0 0.0
        %352 = vmatprep.subr.mxu0 0.0
        %353 = vmatpush1.msra.mxu0 0.0
        %354 = vmatprep.subr.mxu0 0.0
        %355 = vmatpush1.msra.mxu0 0.0
        %356 = vmatprep.subr.mxu0 0.0
        %357 = vmatpush1.msra.mxu0 0.0
        %358 = vmatprep.subr.mxu0 0.0
        %359 = vmatpush1.msra.mxu0 0.0
        %360 = vmatprep.subr.mxu0 0.0
        %361 = vmatpush1.msra.mxu0 0.0
        %362 = vmatprep.subr.mxu0 0.0
        %363 = vmatpush1.msra.mxu0 0.0
        %364 = vmatprep.subr.mxu0 0.0
        %365 = vmatpush1.msra.mxu0 0.0
        %366 = vmatprep.subr.mxu0 0.0
        %367 = vmatpush1.msra.mxu0 0.0
        %368 = vmatprep.subr.mxu0 0.0
        %369 = vmatpush1.msra.mxu0 0.0
        %370 = vmatprep.subr.mxu0 0.0
        %371 = vmatpush1.msra.mxu0 0.0
        %372 = vmatprep.subr.mxu0 0.0
        %373 = vmatpush1.msra.mxu0 0.0
        %374 = vmatprep.subr.mxu0 0.0
        %375 = vmatpush1.msra.mxu0 0.0
        %376 = vmatprep.mubr.f32.mxu0 0.0
        %377 = vmatmul.mubr.f32.gmra.mrb[0].mxu0 %v301
        %v378 = vpop.f32.mrb[0].mxu0
        %v379 = vadd.f32 0.0, %v378
        %v380 = vpop.f32.mrb[0].mxu0
        %381 = vmatprep.mubr.f32.mxu0 0.0
        %382 = vmatmul.mubr.f32.gmra.mrb[0].mxu0 %v304
        %v383 = vpop.f32.mrb[0].mxu0
        %v384 = vadd.f32 0.0, %v383
        %v385 = vpop.f32.mrb[0].mxu0
        %386 = vmatprep.mubr.f32.mxu0 0.0
        %387 = vmatmul.mubr.f32.gmra.mrb[0].mxu0 %v307
        %v388 = vpop.f32.mrb[0].mxu0
        %v389 = vadd.f32 0.0, %v388
        %v390 = vpop.f32.mrb[0].mxu0
        %391 = vmatprep.mubr.f32.mxu0 0.0
        %392 = vmatmul.mubr.f32.gmra.mrb[0].mxu0 %v310
        %v393 = vpop.f32.mrb[0].mxu0
        %v394 = vadd.f32 0.0, %v393
        %v395 = vpop.f32.mrb[0].mxu0
        %396 = vdwg.mxu0
        %vm397 = vcmask 261120
        %398 = vst.msk [vmem:[%s207] sm:$0xff] %vm397, %v379
        %399 = vst.msk [vmem:[%s207 + $0x8] sm:$0xff] %vm397, %v384
        %400 = vst.msk [vmem:[%s207 + $0x10] sm:$0xff] %vm397, %v389
        %401 = vst.msk [vmem:[%s207 + $0x18] sm:$0xff] %vm397, %v394
        %s402 = scalar_lea.vmem %s185, 16 [#allocation2]
        %v403 = vld [vmem:[%s402] sm:$0xff]
        %v404 = vld [vmem:[%s402 + $0x8] sm:$0xff]
        %v406 = vsel %vm218, %v403, 0
        %v409 = vsel %vm218, %v404, 0
        %411 = vmatprep.subr.mxu0 0.0
        %412 = vmatpush1.msra.mxu0 %v214
        %413 = vmatprep.subr.mxu0 0.0
        %414 = vmatpush1.msra.mxu0 %v215
        %415 = vmatprep.subr.mxu0 0.0
        %416 = vmatpush1.msra.mxu0 0.0
        %417 = vmatprep.subr.mxu0 0.0
        %418 = vmatpush1.msra.mxu0 0.0
        %419 = vmatprep.subr.mxu0 0.0
        %420 = vmatpush1.msra.mxu0 0.0
        %421 = vmatprep.subr.mxu0 0.0
        %422 = vmatpush1.msra.mxu0 0.0
        %423 = vmatprep.subr.mxu0 0.0
        %424 = vmatpush1.msra.mxu0 0.0
        %425 = vmatprep.subr.mxu0 0.0
        %426 = vmatpush1.msra.mxu0 0.0
        %427 = vmatprep.subr.mxu0 0.0
        %428 = vmatpush1.msra.mxu0 0.0
        %429 = vmatprep.subr.mxu0 0.0
        %430 = vmatpush1.msra.mxu0 0.0
        %431 = vmatprep.subr.mxu0 0.0
        %432 = vmatpush1.msra.mxu0 0.0
        %433 = vmatprep.subr.mxu0 0.0
        %434 = vmatpush1.msra.mxu0 0.0
        %435 = vmatprep.subr.mxu0 0.0
        %436 = vmatpush1.msra.mxu0 0.0
        %437 = vmatprep.subr.mxu0 0.0
        %438 = vmatpush1.msra.mxu0 0.0
        %439 = vmatprep.subr.mxu0 0.0
        %440 = vmatpush1.msra.mxu0 0.0
        %441 = vmatprep.subr.mxu0 0.0
        %442 = vmatpush1.msra.mxu0 0.0
        %443 = vmatprep.subr.mxu0 0.0
        %444 = vmatpush1.msra.mxu0 0.0
        %445 = vmatprep.subr.mxu0 0.0
        %446 = vmatpush1.msra.mxu0 0.0
        %447 = vmatprep.subr.mxu0 0.0
        %448 = vmatpush1.msra.mxu0 0.0
        %449 = vmatprep.subr.mxu0 0.0
        %450 = vmatpush1.msra.mxu0 0.0
        %451 = vmatprep.subr.mxu0 0.0
        %452 = vmatpush1.msra.mxu0 0.0
        %453 = vmatprep.subr.mxu0 0.0
        %454 = vmatpush1.msra.mxu0 0.0
        %455 = vmatprep.subr.mxu0 0.0
        %456 = vmatpush1.msra.mxu0 0.0
        %457 = vmatprep.subr.mxu0 0.0
        %458 = vmatpush1.msra.mxu0 0.0
        %459 = vmatprep.subr.mxu0 0.0
        %460 = vmatpush1.msra.mxu0 0.0
        %461 = vmatprep.subr.mxu0 0.0
        %462 = vmatpush1.msra.mxu0 0.0
        %463 = vmatprep.subr.mxu0 0.0
        %464 = vmatpush1.msra.mxu0 0.0
        %465 = vmatprep.subr.mxu0 0.0
        %466 = vmatpush1.msra.mxu0 0.0
        %467 = vmatprep.subr.mxu0 0.0
        %468 = vmatpush1.msra.mxu0 0.0
        %469 = vmatprep.subr.mxu0 0.0
        %470 = vmatpush1.msra.mxu0 0.0
        %471 = vmatprep.subr.mxu0 0.0
        %472 = vmatpush1.msra.mxu0 0.0
        %473 = vmatprep.subr.mxu0 0.0
        %474 = vmatpush1.msra.mxu0 0.0
        %475 = vmatprep.mubr.f32.mxu0 0.0
        %476 = vmatmul.mubr.f32.gmra.mrb[0].mxu0 %v406
        %v477 = vpop.f32.mrb[0].mxu0
        %v478 = vadd.f32 0.0, %v477
        %v479 = vpop.f32.mrb[0].mxu0
        %480 = vmatprep.mubr.f32.mxu0 0.0
        %481 = vmatmul.mubr.f32.gmra.mrb[0].mxu0 %v409
        %v482 = vpop.f32.mrb[0].mxu0
        %v483 = vadd.f32 0.0, %v482
        %v484 = vpop.f32.mrb[0].mxu0
        %485 = vdwg.mxu0
        %486 = vmatprep.subr.mxu0 0.0
        %487 = vmatpush1.msra.mxu0 %v478
        %488 = vmatprep.subr.mxu0 0.0
        %489 = vmatpush1.msra.mxu0 %v483
        %490 = vmatprep.subr.mxu0 0.0
        %491 = vmatpush1.msra.mxu0 0.0
        %492 = vmatprep.subr.mxu0 0.0
        %493 = vmatpush1.msra.mxu0 0.0
        %494 = vmatprep.subr.mxu0 0.0
        %495 = vmatpush1.msra.mxu0 0.0
        %496 = vmatprep.subr.mxu0 0.0
        %497 = vmatpush1.msra.mxu0 0.0
        %498 = vmatprep.subr.mxu0 0.0
        %499 = vmatpush1.msra.mxu0 0.0
        %500 = vmatprep.subr.mxu0 0.0
        %501 = vmatpush1.msra.mxu0 0.0
        %502 = vmatprep.subr.mxu0 0.0
        %503 = vmatpush1.msra.mxu0 0.0
        %504 = vmatprep.subr.mxu0 0.0
        %505 = vmatpush1.msra.mxu0 0.0
        %506 = vmatprep.subr.mxu0 0.0
        %507 = vmatpush1.msra.mxu0 0.0
        %508 = vmatprep.subr.mxu0 0.0
        %509 = vmatpush1.msra.mxu0 0.0
        %510 = vmatprep.subr.mxu0 0.0
        %511 = vmatpush1.msra.mxu0 0.0
        %512 = vmatprep.subr.mxu0 0.0
        %513 = vmatpush1.msra.mxu0 0.0
        %514 = vmatprep.subr.mxu0 0.0
        %515 = vmatpush1.msra.mxu0 0.0
        %516 = vmatprep.subr.mxu0 0.0
        %517 = vmatpush1.msra.mxu0 0.0
        %518 = vmatprep.subr.mxu0 0.0
        %519 = vmatpush1.msra.mxu0 0.0
        %520 = vmatprep.subr.mxu0 0.0
        %521 = vmatpush1.msra.mxu0 0.0
        %522 = vmatprep.subr.mxu0 0.0
        %523 = vmatpush1.msra.mxu0 0.0
        %524 = vmatprep.subr.mxu0 0.0
        %525 = vmatpush1.msra.mxu0 0.0
        %526 = vmatprep.subr.mxu0 0.0
        %527 = vmatpush1.msra.mxu0 0.0
        %528 = vmatprep.subr.mxu0 0.0
        %529 = vmatpush1.msra.mxu0 0.0
        %530 = vmatprep.subr.mxu0 0.0
        %531 = vmatpush1.msra.mxu0 0.0
        %532 = vmatprep.subr.mxu0 0.0
        %533 = vmatpush1.msra.mxu0 0.0
        %534 = vmatprep.subr.mxu0 0.0
        %535 = vmatpush1.msra.mxu0 0.0
        %536 = vmatprep.subr.mxu0 0.0
        %537 = vmatpush1.msra.mxu0 0.0
        %538 = vmatprep.subr.mxu0 0.0
        %539 = vmatpush1.msra.mxu0 0.0
        %540 = vmatprep.subr.mxu0 0.0
        %541 = vmatpush1.msra.mxu0 0.0
        %542 = vmatprep.subr.mxu0 0.0
        %543 = vmatpush1.msra.mxu0 0.0
        %544 = vmatprep.subr.mxu0 0.0
        %545 = vmatpush1.msra.mxu0 0.0
        %546 = vmatprep.subr.mxu0 0.0
        %547 = vmatpush1.msra.mxu0 0.0
        %548 = vmatprep.subr.mxu0 0.0
        %549 = vmatpush1.msra.mxu0 0.0
        %550 = vmatprep.mubr.f32.mxu0 0.0
        %551 = vmatmul.mubr.f32.gmra.mrb[0].mxu0 %v301
        %v552 = vpop.f32.mrb[0].mxu0
        %v553 = vadd.f32 0.0, %v552
        %v554 = vpop.f32.mrb[0].mxu0
        %555 = vmatprep.mubr.f32.mxu0 0.0
        %556 = vmatmul.mubr.f32.gmra.mrb[0].mxu0 %v304
        %v557 = vpop.f32.mrb[0].mxu0
        %v558 = vadd.f32 0.0, %v557
        %v559 = vpop.f32.mrb[0].mxu0
        %560 = vmatprep.mubr.f32.mxu0 0.0
        %561 = vmatmul.mubr.f32.gmra.mrb[0].mxu0 %v307
        %v562 = vpop.f32.mrb[0].mxu0
        %v563 = vadd.f32 0.0, %v562
        %v564 = vpop.f32.mrb[0].mxu0
        %565 = vmatprep.mubr.f32.mxu0 0.0
        %566 = vmatmul.mubr.f32.gmra.mrb[0].mxu0 %v310
        %v567 = vpop.f32.mrb[0].mxu0
        %v568 = vadd.f32 0.0, %v567
        %v569 = vpop.f32.mrb[0].mxu0
        %570 = vdwg.mxu0
        %s571 = scalar_lea.vmem %s207, 32 [#allocation5]
        %572 = vst.msk [vmem:[%s571] sm:$0xff] %vm397, %v553
        %573 = vst.msk [vmem:[%s571 + $0x8] sm:$0xff] %vm397, %v558
        %574 = vst.msk [vmem:[%s571 + $0x10] sm:$0xff] %vm397, %v563
        %575 = vst.msk [vmem:[%s571 + $0x18] sm:$0xff] %vm397, %v568
        %s576 = scalar_lea.vmem %s185, 32 [#allocation2]
        %v577 = vld [vmem:[%s576] sm:$0xff]
        %v578 = vld [vmem:[%s576 + $0x8] sm:$0xff]
        %v580 = vsel %vm218, %v577, 0
        %v583 = vsel %vm218, %v578, 0
        %585 = vmatprep.subr.mxu0 0.0
        %586 = vmatpush1.msra.mxu0 %v214
        %587 = vmatprep.subr.mxu0 0.0
        %588 = vmatpush1.msra.mxu0 %v215
        %589 = vmatprep.subr.mxu0 0.0
        %590 = vmatpush1.msra.mxu0 0.0
        %591 = vmatprep.subr.mxu0 0.0
        %592 = vmatpush1.msra.mxu0 0.0
        %593 = vmatprep.subr.mxu0 0.0
        %594 = vmatpush1.msra.mxu0 0.0
        %595 = vmatprep.subr.mxu0 0.0
        %596 = vmatpush1.msra.mxu0 0.0
        %597 = vmatprep.subr.mxu0 0.0
        %598 = vmatpush1.msra.mxu0 0.0
        %599 = vmatprep.subr.mxu0 0.0
        %600 = vmatpush1.msra.mxu0 0.0
        %601 = vmatprep.subr.mxu0 0.0
        %602 = vmatpush1.msra.mxu0 0.0
        %603 = vmatprep.subr.mxu0 0.0
        %604 = vmatpush1.msra.mxu0 0.0
        %605 = vmatprep.subr.mxu0 0.0
        %606 = vmatpush1.msra.mxu0 0.0
        %607 = vmatprep.subr.mxu0 0.0
        %608 = vmatpush1.msra.mxu0 0.0
        %609 = vmatprep.subr.mxu0 0.0
        %610 = vmatpush1.msra.mxu0 0.0
        %611 = vmatprep.subr.mxu0 0.0
        %612 = vmatpush1.msra.mxu0 0.0
        %613 = vmatprep.subr.mxu0 0.0
        %614 = vmatpush1.msra.mxu0 0.0
        %615 = vmatprep.subr.mxu0 0.0
        %616 = vmatpush1.msra.mxu0 0.0
        %617 = vmatprep.subr.mxu0 0.0
        %618 = vmatpush1.msra.mxu0 0.0
        %619 = vmatprep.subr.mxu0 0.0
        %620 = vmatpush1.msra.mxu0 0.0
        %621 = vmatprep.subr.mxu0 0.0
        %622 = vmatpush1.msra.mxu0 0.0
        %623 = vmatprep.subr.mxu0 0.0
        %624 = vmatpush1.msra.mxu0 0.0
        %625 = vmatprep.subr.mxu0 0.0
        %626 = vmatpush1.msra.mxu0 0.0
        %627 = vmatprep.subr.mxu0 0.0
        %628 = vmatpush1.msra.mxu0 0.0
        %629 = vmatprep.subr.mxu0 0.0
        %630 = vmatpush1.msra.mxu0 0.0
        %631 = vmatprep.subr.mxu0 0.0
        %632 = vmatpush1.msra.mxu0 0.0
        %633 = vmatprep.subr.mxu0 0.0
        %634 = vmatpush1.msra.mxu0 0.0
        %635 = vmatprep.subr.mxu0 0.0
        %636 = vmatpush1.msra.mxu0 0.0
        %637 = vmatprep.subr.mxu0 0.0
        %638 = vmatpush1.msra.mxu0 0.0
        %639 = vmatprep.subr.mxu0 0.0
        %640 = vmatpush1.msra.mxu0 0.0
        %641 = vmatprep.subr.mxu0 0.0
        %642 = vmatpush1.msra.mxu0 0.0
        %643 = vmatprep.subr.mxu0 0.0
        %644 = vmatpush1.msra.mxu0 0.0
        %645 = vmatprep.subr.mxu0 0.0
        %646 = vmatpush1.msra.mxu0 0.0
        %647 = vmatprep.subr.mxu0 0.0
        %648 = vmatpush1.msra.mxu0 0.0
        %649 = vmatprep.mubr.f32.mxu0 0.0
        %650 = vmatmul.mubr.f32.gmra.mrb[0].mxu0 %v580
        %v651 = vpop.f32.mrb[0].mxu0
        %v652 = vadd.f32 0.0, %v651
        %v653 = vpop.f32.mrb[0].mxu0
        %654 = vmatprep.mubr.f32.mxu0 0.0
        %655 = vmatmul.mubr.f32.gmra.mrb[0].mxu0 %v583
        %v656 = vpop.f32.mrb[0].mxu0
        %v657 = vadd.f32 0.0, %v656
        %v658 = vpop.f32.mrb[0].mxu0
        %659 = vdwg.mxu0
        %660 = vmatprep.subr.mxu0 0.0
        %661 = vmatpush1.msra.mxu0 %v652
        %662 = vmatprep.subr.mxu0 0.0
        %663 = vmatpush1.msra.mxu0 %v657
        %664 = vmatprep.subr.mxu0 0.0
        %665 = vmatpush1.msra.mxu0 0.0
        %666 = vmatprep.subr.mxu0 0.0
        %667 = vmatpush1.msra.mxu0 0.0
        %668 = vmatprep.subr.mxu0 0.0
        %669 = vmatpush1.msra.mxu0 0.0
        %670 = vmatprep.subr.mxu0 0.0
        %671 = vmatpush1.msra.mxu0 0.0
        %672 = vmatprep.subr.mxu0 0.0
        %673 = vmatpush1.msra.mxu0 0.0
        %674 = vmatprep.subr.mxu0 0.0
        %675 = vmatpush1.msra.mxu0 0.0
        %676 = vmatprep.subr.mxu0 0.0
        %677 = vmatpush1.msra.mxu0 0.0
        %678 = vmatprep.subr.mxu0 0.0
        %679 = vmatpush1.msra.mxu0 0.0
        %680 = vmatprep.subr.mxu0 0.0
        %681 = vmatpush1.msra.mxu0 0.0
        %682 = vmatprep.subr.mxu0 0.0
        %683 = vmatpush1.msra.mxu0 0.0
        %684 = vmatprep.subr.mxu0 0.0
        %685 = vmatpush1.msra.mxu0 0.0
        %686 = vmatprep.subr.mxu0 0.0
        %687 = vmatpush1.msra.mxu0 0.0
        %688 = vmatprep.subr.mxu0 0.0
        %689 = vmatpush1.msra.mxu0 0.0
        %690 = vmatprep.subr.mxu0 0.0
        %691 = vmatpush1.msra.mxu0 0.0
        %692 = vmatprep.subr.mxu0 0.0
        %693 = vmatpush1.msra.mxu0 0.0
        %694 = vmatprep.subr.mxu0 0.0
        %695 = vmatpush1.msra.mxu0 0.0
        %696 = vmatprep.subr.mxu0 0.0
        %697 = vmatpush1.msra.mxu0 0.0
        %698 = vmatprep.subr.mxu0 0.0
        %699 = vmatpush1.msra.mxu0 0.0
        %700 = vmatprep.subr.mxu0 0.0
        %701 = vmatpush1.msra.mxu0 0.0
        %702 = vmatprep.subr.mxu0 0.0
        %703 = vmatpush1.msra.mxu0 0.0
        %704 = vmatprep.subr.mxu0 0.0
        %705 = vmatpush1.msra.mxu0 0.0
        %706 = vmatprep.subr.mxu0 0.0
        %707 = vmatpush1.msra.mxu0 0.0
        %708 = vmatprep.subr.mxu0 0.0
        %709 = vmatpush1.msra.mxu0 0.0
        %710 = vmatprep.subr.mxu0 0.0
        %711 = vmatpush1.msra.mxu0 0.0
        %712 = vmatprep.subr.mxu0 0.0
        %713 = vmatpush1.msra.mxu0 0.0
        %714 = vmatprep.subr.mxu0 0.0
        %715 = vmatpush1.msra.mxu0 0.0
        %716 = vmatprep.subr.mxu0 0.0
        %717 = vmatpush1.msra.mxu0 0.0
        %718 = vmatprep.subr.mxu0 0.0
        %719 = vmatpush1.msra.mxu0 0.0
        %720 = vmatprep.subr.mxu0 0.0
        %721 = vmatpush1.msra.mxu0 0.0
        %722 = vmatprep.subr.mxu0 0.0
        %723 = vmatpush1.msra.mxu0 0.0
        %724 = vmatprep.mubr.f32.mxu0 0.0
        %725 = vmatmul.mubr.f32.gmra.mrb[0].mxu0 %v301
        %v726 = vpop.f32.mrb[0].mxu0
        %v727 = vadd.f32 0.0, %v726
        %v728 = vpop.f32.mrb[0].mxu0
        %729 = vmatprep.mubr.f32.mxu0 0.0
        %730 = vmatmul.mubr.f32.gmra.mrb[0].mxu0 %v304
        %v731 = vpop.f32.mrb[0].mxu0
        %v732 = vadd.f32 0.0, %v731
        %v733 = vpop.f32.mrb[0].mxu0
        %734 = vmatprep.mubr.f32.mxu0 0.0
        %735 = vmatmul.mubr.f32.gmra.mrb[0].mxu0 %v307
        %v736 = vpop.f32.mrb[0].mxu0
        %v737 = vadd.f32 0.0, %v736
        %v738 = vpop.f32.mrb[0].mxu0
        %739 = vmatprep.mubr.f32.mxu0 0.0
        %740 = vmatmul.mubr.f32.gmra.mrb[0].mxu0 %v310
        %v741 = vpop.f32.mrb[0].mxu0
        %v742 = vadd.f32 0.0, %v741
        %v743 = vpop.f32.mrb[0].mxu0
        %744 = vdwg.mxu0
        %s745 = scalar_lea.vmem %s207, 64 [#allocation5]
        %746 = vst.msk [vmem:[%s745] sm:$0xff] %vm397, %v727
        %747 = vst.msk [vmem:[%s745 + $0x8] sm:$0xff] %vm397, %v732
        %748 = vst.msk [vmem:[%s745 + $0x10] sm:$0xff] %vm397, %v737
        %749 = vst.msk [vmem:[%s745 + $0x18] sm:$0xff] %vm397, %v742
        %s750 = scalar_lea.vmem %s185, 48 [#allocation2]
        %v751 = vld [vmem:[%s750] sm:$0xff]
        %v752 = vld [vmem:[%s750 + $0x8] sm:$0xff]
        %v754 = vsel %vm218, %v751, 0
        %v757 = vsel %vm218, %v752, 0
        %759 = vmatprep.subr.mxu0 0.0
        %760 = vmatpush1.msra.mxu0 %v214
        %761 = vmatprep.subr.mxu0 0.0
        %762 = vmatpush1.msra.mxu0 %v215
        %763 = vmatprep.subr.mxu0 0.0
        %764 = vmatpush1.msra.mxu0 0.0
        %765 = vmatprep.subr.mxu0 0.0
        %766 = vmatpush1.msra.mxu0 0.0
        %767 = vmatprep.subr.mxu0 0.0
        %768 = vmatpush1.msra.mxu0 0.0
        %769 = vmatprep.subr.mxu0 0.0
        %770 = vmatpush1.msra.mxu0 0.0
        %771 = vmatprep.subr.mxu0 0.0
        %772 = vmatpush1.msra.mxu0 0.0
        %773 = vmatprep.subr.mxu0 0.0
        %774 = vmatpush1.msra.mxu0 0.0
        %775 = vmatprep.subr.mxu0 0.0
        %776 = vmatpush1.msra.mxu0 0.0
        %777 = vmatprep.subr.mxu0 0.0
        %778 = vmatpush1.msra.mxu0 0.0
        %779 = vmatprep.subr.mxu0 0.0
        %780 = vmatpush1.msra.mxu0 0.0
        %781 = vmatprep.subr.mxu0 0.0
        %782 = vmatpush1.msra.mxu0 0.0
        %783 = vmatprep.subr.mxu0 0.0
        %784 = vmatpush1.msra.mxu0 0.0
        %785 = vmatprep.subr.mxu0 0.0
        %786 = vmatpush1.msra.mxu0 0.0
        %787 = vmatprep.subr.mxu0 0.0
        %788 = vmatpush1.msra.mxu0 0.0
        %789 = vmatprep.subr.mxu0 0.0
        %790 = vmatpush1.msra.mxu0 0.0
        %791 = vmatprep.subr.mxu0 0.0
        %792 = vmatpush1.msra.mxu0 0.0
        %793 = vmatprep.subr.mxu0 0.0
        %794 = vmatpush1.msra.mxu0 0.0
        %795 = vmatprep.subr.mxu0 0.0
        %796 = vmatpush1.msra.mxu0 0.0
        %797 = vmatprep.subr.mxu0 0.0
        %798 = vmatpush1.msra.mxu0 0.0
        %799 = vmatprep.subr.mxu0 0.0
        %800 = vmatpush1.msra.mxu0 0.0
        %801 = vmatprep.subr.mxu0 0.0
        %802 = vmatpush1.msra.mxu0 0.0
        %803 = vmatprep.subr.mxu0 0.0
        %804 = vmatpush1.msra.mxu0 0.0
        %805 = vmatprep.subr.mxu0 0.0
        %806 = vmatpush1.msra.mxu0 0.0
        %807 = vmatprep.subr.mxu0 0.0
        %808 = vmatpush1.msra.mxu0 0.0
        %809 = vmatprep.subr.mxu0 0.0
        %810 = vmatpush1.msra.mxu0 0.0
        %811 = vmatprep.subr.mxu0 0.0
        %812 = vmatpush1.msra.mxu0 0.0
        %813 = vmatprep.subr.mxu0 0.0
        %814 = vmatpush1.msra.mxu0 0.0
        %815 = vmatprep.subr.mxu0 0.0
        %816 = vmatpush1.msra.mxu0 0.0
        %817 = vmatprep.subr.mxu0 0.0
        %818 = vmatpush1.msra.mxu0 0.0
        %819 = vmatprep.subr.mxu0 0.0
        %820 = vmatpush1.msra.mxu0 0.0
        %821 = vmatprep.subr.mxu0 0.0
        %822 = vmatpush1.msra.mxu0 0.0
        %823 = vmatprep.mubr.f32.mxu0 0.0
        %824 = vmatmul.mubr.f32.gmra.mrb[0].mxu0 %v754
        %v825 = vpop.f32.mrb[0].mxu0
        %v826 = vadd.f32 0.0, %v825
        %v827 = vpop.f32.mrb[0].mxu0
        %828 = vmatprep.mubr.f32.mxu0 0.0
        %829 = vmatmul.mubr.f32.gmra.mrb[0].mxu0 %v757
        %v830 = vpop.f32.mrb[0].mxu0
        %v831 = vadd.f32 0.0, %v830
        %v832 = vpop.f32.mrb[0].mxu0
        %833 = vdwg.mxu0
        %834 = vmatprep.subr.mxu0 0.0
        %835 = vmatpush1.msra.mxu0 %v826
        %836 = vmatprep.subr.mxu0 0.0
        %837 = vmatpush1.msra.mxu0 %v831
        %838 = vmatprep.subr.mxu0 0.0
        %839 = vmatpush1.msra.mxu0 0.0
        %840 = vmatprep.subr.mxu0 0.0
        %841 = vmatpush1.msra.mxu0 0.0
        %842 = vmatprep.subr.mxu0 0.0
        %843 = vmatpush1.msra.mxu0 0.0
        %844 = vmatprep.subr.mxu0 0.0
        %845 = vmatpush1.msra.mxu0 0.0
        %846 = vmatprep.subr.mxu0 0.0
        %847 = vmatpush1.msra.mxu0 0.0
        %848 = vmatprep.subr.mxu0 0.0
        %849 = vmatpush1.msra.mxu0 0.0
        %850 = vmatprep.subr.mxu0 0.0
        %851 = vmatpush1.msra.mxu0 0.0
        %852 = vmatprep.subr.mxu0 0.0
        %853 = vmatpush1.msra.mxu0 0.0
        %854 = vmatprep.subr.mxu0 0.0
        %855 = vmatpush1.msra.mxu0 0.0
        %856 = vmatprep.subr.mxu0 0.0
        %857 = vmatpush1.msra.mxu0 0.0
        %858 = vmatprep.subr.mxu0 0.0
        %859 = vmatpush1.msra.mxu0 0.0
        %860 = vmatprep.subr.mxu0 0.0
        %861 = vmatpush1.msra.mxu0 0.0
        %862 = vmatprep.subr.mxu0 0.0
        %863 = vmatpush1.msra.mxu0 0.0
        %864 = vmatprep.subr.mxu0 0.0
        %865 = vmatpush1.msra.mxu0 0.0
        %866 = vmatprep.subr.mxu0 0.0
        %867 = vmatpush1.msra.mxu0 0.0
        %868 = vmatprep.subr.mxu0 0.0
        %869 = vmatpush1.msra.mxu0 0.0
        %870 = vmatprep.subr.mxu0 0.0
        %871 = vmatpush1.msra.mxu0 0.0
        %872 = vmatprep.subr.mxu0 0.0
        %873 = vmatpush1.msra.mxu0 0.0
        %874 = vmatprep.subr.mxu0 0.0
        %875 = vmatpush1.msra.mxu0 0.0
        %876 = vmatprep.subr.mxu0 0.0
        %877 = vmatpush1.msra.mxu0 0.0
        %878 = vmatprep.subr.mxu0 0.0
        %879 = vmatpush1.msra.mxu0 0.0
        %880 = vmatprep.subr.mxu0 0.0
        %881 = vmatpush1.msra.mxu0 0.0
        %882 = vmatprep.subr.mxu0 0.0
        %883 = vmatpush1.msra.mxu0 0.0
        %884 = vmatprep.subr.mxu0 0.0
        %885 = vmatpush1.msra.mxu0 0.0
        %886 = vmatprep.subr.mxu0 0.0
        %887 = vmatpush1.msra.mxu0 0.0
        %888 = vmatprep.subr.mxu0 0.0
        %889 = vmatpush1.msra.mxu0 0.0
        %890 = vmatprep.subr.mxu0 0.0
        %891 = vmatpush1.msra.mxu0 0.0
        %892 = vmatprep.subr.mxu0 0.0
        %893 = vmatpush1.msra.mxu0 0.0
        %894 = vmatprep.subr.mxu0 0.0
        %895 = vmatpush1.msra.mxu0 0.0
        %896 = vmatprep.subr.mxu0 0.0
        %897 = vmatpush1.msra.mxu0 0.0
        %898 = vmatprep.mubr.f32.mxu0 0.0
        %899 = vmatmul.mubr.f32.gmra.mrb[0].mxu0 %v301
        %v900 = vpop.f32.mrb[0].mxu0
        %v901 = vadd.f32 0.0, %v900
        %v902 = vpop.f32.mrb[0].mxu0
        %903 = vmatprep.mubr.f32.mxu0 0.0
        %904 = vmatmul.mubr.f32.gmra.mrb[0].mxu0 %v304
        %v905 = vpop.f32.mrb[0].mxu0
        %v906 = vadd.f32 0.0, %v905
        %v907 = vpop.f32.mrb[0].mxu0
        %908 = vmatprep.mubr.f32.mxu0 0.0
        %909 = vmatmul.mubr.f32.gmra.mrb[0].mxu0 %v307
        %v910 = vpop.f32.mrb[0].mxu0
        %v911 = vadd.f32 0.0, %v910
        %v912 = vpop.f32.mrb[0].mxu0
        %913 = vmatprep.mubr.f32.mxu0 0.0
        %914 = vmatmul.mubr.f32.gmra.mrb[0].mxu0 %v310
        %v915 = vpop.f32.mrb[0].mxu0
        %v916 = vadd.f32 0.0, %v915
        %v917 = vpop.f32.mrb[0].mxu0
        %918 = vdwg.mxu0
        %s919 = scalar_lea.vmem %s207, 96 [#allocation5]
        %920 = vst.msk [vmem:[%s919] sm:$0xff] %vm397, %v901
        %921 = vst.msk [vmem:[%s919 + $0x8] sm:$0xff] %vm397, %v906
        %922 = vst.msk [vmem:[%s919 + $0x10] sm:$0xff] %vm397, %v911
        %923 = vst.msk [vmem:[%s919 + $0x18] sm:$0xff] %vm397, %v916
        %s924 = sand.u32 %s112, 1
        %s925 = scalar_lea.sflag [#allocation4], %s924
        %s926 = sand.u32 %s112, 1
        %s927 = smul.addr %s926, 128
        %s928 = scalar_lea.vmem [#allocation5], %s927
        // Predicated region
        $region37: #{tpu_custom_call.1} parent=31 // pred_check
          %p929 = pneg %p122
        $region38: #{tpu_custom_call.1} parent=31 // pred_check_branch
          %931 = sbr.rel (%p929) target = $region40
        $region39: #{tpu_custom_call.1} parent=31 // pred_region
          %s932 = smul.u32 4, %s25
          %s934 = ssub.s32 2048, 2048
          %935 = vsyncadd %s925, %s934
          %s936 = smul.addr %s932, 4
          %s937 = smul.addr %s24, 16
          %s938 = sadd.s32 %s936, %s937
          %s939 = smul.addr %s938, 128
          %s940 = scalar_lea.hbm %s3, %s939
          %s941 = sshll.u32 %s928, 4
          %s942 = int_to_ptr.vmem [resolvable:$true] %s941
          %947 = dma.vmem_to_hbm [thread:$0]  %s942, 2048, %s940, %s925, 128, 128, 8
        $region40: #{tpu_custom_call.1} parent=31 // pred_fallthru
          _
      $region32: #{tpu_custom_call.1} parent=5 // pred_fallthru
        _
      %p948 = scmp.le.s32.totalorder 2, %s15
      // Predicated region
      $region41: #{tpu_custom_call.1} parent=5 // pred_check
        %p949 = pneg %p948
      $region42: #{tpu_custom_call.1} parent=5 // pred_check_branch
        %951 = sbr.rel (%p949) target = $region44
      $region43: #{tpu_custom_call.1} parent=5 // pred_region
        %s952 = ssub.s32 %s15, 2
        // Predicated region
        $region45: #{tpu_custom_call.1} parent=43 // pred_check
          %p953 = pneg %p128
        $region46: #{tpu_custom_call.1} parent=43 // pred_check_branch
          %955 = sbr.rel (%p953) target = $region48
        $region47: #{tpu_custom_call.1} parent=43 // pred_region
          %s956 = sand.u32 %s113, 1
          %s957 = scalar_lea.sflag [#allocation4], %s956
          %s958 = sand.u32 %s113, 1
          %s959 = smul.addr %s958, 128
          %s960 = scalar_lea.vmem [#allocation5], %s959
          %961 = dma.done %s957, 2048
        $region48: #{tpu_custom_call.1} parent=43 // pred_fallthru
          _
      $region44: #{tpu_custom_call.1} parent=5 // pred_fallthru
        _
    $region6: #{tpu_custom_call.1} parent=1 // loop_footer
      %s19 = sadd.s32 1, %s15
    $region7: #{tpu_custom_call.1} parent=1 // loop_footer_branch
      %14 = sbr.rel target = $region3
    $region8: #{tpu_custom_call.1} parent=1 // loop_exit
      _
    %962 = vsyncpa [#allocation3], 1
    %s963 = scalar_lea.sflag [#allocation3], 1
    %964 = vsyncpa %s963, 1
    %965 = vsyncpa [#allocation4], 1
    %s966 = scalar_lea.sflag [#allocation4], 1
    %967 = vsyncpa %s966, 1

</llo_original>
